<compile_context>
chip_gen: v7x
topology: tpu7x:2x2x1
jax: 0.10.0
libtpu: 0.0.40
codegen_flags: <defaults>
</compile_context>

<pallas_src>
import functools

import jax
import jax.numpy as jnp
from jax.experimental import pallas as pl
from jax.experimental.pallas import tpu as pltpu


def _round_up(x, m):
    return ((x + m - 1) // m) * m


# ---------------------------------------------------------------------------
# Pallas kernel: fused (single-matmul) conv + LayerNorm + activation.
# Lane axis = flattened zero-padded spatial positions (B*Hp*Wp).
#   x_ref : (Cin, TS)          bf16   main lane tile
#   h_ref : (Cin, halo_ts)     bf16   right-halo lanes (next halo_ts lanes)
#   w_ref : (Cout, kh*kw*Cin)  bf16   tap-stacked weight matrix
#   g_ref : (Cout, 1)          f32    LayerNorm gamma
#   b_ref : (Cout, 1)          f32    LayerNorm beta
#   o_ref : (Cout, TS)         bf16   lane-dense output tile (Y^T)
# ---------------------------------------------------------------------------
def _conv_ln_act_kernel(x_ref, h_ref, w_ref, g_ref, b_ref, o_ref, *,
                        offsets, ts, use_ln, act, eps):
    xh = jnp.concatenate([x_ref[...], h_ref[...]], axis=1)   # (Cin, TS+halo_ts)
    # Stacked RHS for one big matmul: one lane-shifted slice per tap,
    # concatenated along the sublane axis -> single K = kh*kw*Cin contraction.
    rhs = jnp.concatenate([xh[:, off:off + ts] for off in offsets], axis=0)
    y = jnp.dot(w_ref[...], rhs, preferred_element_type=jnp.float32)  # (Cout, TS)

    if use_ln:
        # channels_first LayerNorm: per lane (output position), normalize over
        # the Cout sublane axis.  Two-pass form, matching the torch reference.
        mu = jnp.mean(y, axis=0, keepdims=True)
        d = y - mu
        var = jnp.mean(d * d, axis=0, keepdims=True)
        y = d * jax.lax.rsqrt(var + eps)
        y = y * g_ref[...] + b_ref[...]

    if act == "relu":
        y = jnp.maximum(y, 0.0)
    elif act == "lrelu":
        y = jnp.where(y >= 0.0, y, 0.2 * y)      # nn.LeakyReLU(0.2)
    elif act == "tanh":
        y = jnp.tanh(y)
    elif act == "sigmoid":
        y = jax.nn.sigmoid(y)
    elif act == "gelu":
        y = jax.nn.gelu(y, approximate=False)    # exact erf, matches nn.GELU
    elif act == "selu":
        y = jax.nn.selu(y)
    elif act == "softmax":
        y = jax.nn.softmax(y, axis=0)            # nn.Softmax(dim=1): channel axis
    elif act == "none":
        pass
    else:
        # TODO(synk): 'prelu' needs a learned per-channel slope parameter.
        raise ValueError(f"unsupported activation {act}")

    o_ref[...] = y.astype(o_ref.dtype)


# ---------------------------------------------------------------------------
# Wrapper: Conv2dBlock.forward(x) with mask=None.
# ---------------------------------------------------------------------------
def conv2d_block_forward(x, weight, gamma, beta, *, stride=1, padding=0,
                         norm="LN", activation="relu", eps=1e-6,
                         lane_tile=512, target_steps=8):
    """x: (B, Cin, H, W) f32 NCHW; weight: (Cout, Cin, kh, kw) torch layout
    (bias=False); gamma/beta: (Cout,) LN affine params (used iff norm=='LN')."""
    if norm not in ("LN", "none"):
        # TODO(synk): 'BN'/'IN' need running/batch statistics; not wired in.
        raise ValueError(f"unsupported norm {norm}")

    B, Cin, H, W = x.shape
    Cout, cin_w, kh, kw = weight.shape
    assert cin_w == Cin
    Hp, Wp = H + 2 * padding, W + 2 * padding
    Ho = (Hp - kh) // stride + 1
    Wo = (Wp - kw) // stride + 1

    # NOTE: the torch module's self.pad is never applied in forward(); padding
    # happens inside nn.Conv2d (zero padding) -- reproduced here.
    xp = jnp.pad(x, ((0, 0), (0, 0), (padding, padding), (padding, padding)))
    # Channels-leading, flattened padded spatial: (Cin, B*Hp*Wp), bf16 stream.
    xf = xp.transpose(1, 0, 2, 3).reshape(Cin, B * Hp * Wp).astype(jnp.bfloat16)

    # At every padded-grid position p:  y[:, p] = sum_{i,j} W_ij @ x[:, p + i*Wp + j]
    # Positions whose shift crosses a row / batch boundary are garbage, but they
    # are exactly the padded-grid positions discarded at the end.
    L = B * Hp * Wp
    halo = (kh - 1) * Wp + (kw - 1)                 # largest tap shift
    halo_ts = _round_up(max(halo, 1), 128)          # lane-aligned halo block

    # Tile so the grid has >= target_steps steps (pipeline steady state, both
    # v7x TensorCores busy); TS must be a multiple of halo_ts for the halo
    # BlockSpec's index arithmetic.
    ts = max(halo_ts, _round_up(max(L // target_steps, 1), halo_ts))
    ts_cap = max(halo_ts, (max(lane_tile, halo_ts) // halo_ts) * halo_ts)
    ts = min(ts, ts_cap)
    m_tot = _round_up(L, ts)
    n_tiles = m_tot // ts
    ratio = ts // halo_ts                            # halo blocks per main tile

    # Single flat input, zero-padded so block t's right halo always exists.
    xf = jnp.pad(xf, ((0, 0), (0, m_tot + halo_ts - L)))

    # Tap-stacked weight matrix: (Cout, kh*kw*Cin), tap-major then Cin,
    # matching the in-kernel RHS stacking order.
    KK = kh * kw * Cin
    w_flat = weight.transpose(0, 2, 3, 1).reshape(Cout, KK).astype(jnp.bfloat16)
    offsets = tuple(i * Wp + j for i in range(kh) for j in range(kw))

    g2 = gamma.reshape(Cout, 1).astype(jnp.float32)
    b2 = beta.reshape(Cout, 1).astype(jnp.float32)

    kernel = functools.partial(
        _conv_ln_act_kernel, offsets=offsets, ts=ts,
        use_ln=(norm == "LN"), act=activation, eps=eps)

    # Generation-aware VMEM budget: ~75% of physical VMEM as the hard cap
    # (≈48 MiB on v7x, ≈96 MiB on v5e/v6e).
    try:
        info = pltpu.get_tpu_info()
        phys_vmem = int(getattr(info, "vmem_capacity_bytes", 64 * 1024 * 1024))
    except Exception:
        phys_vmem = 64 * 1024 * 1024
    vmem_cap = (phys_vmem * 3) // 4

    est = (2 * Cin * (ts + halo_ts) * 2        # double-buffered x main + halo (bf16)
           + 2 * Cout * ts * 2                 # double-buffered bf16 output tile
           + Cout * KK * 2                     # resident weights
           + 2 * Cout * 4                      # gamma / beta
           + KK * ts * 2 + 2 * Cout * ts * 4)  # in-kernel rhs + f32 temporaries
    vmem_limit = int(min(max(4 * est, 32 * 1024 * 1024), vmem_cap))

    y_flat = pl.pallas_call(
        kernel,
        out_shape=jax.ShapeDtypeStruct((Cout, m_tot), jnp.bfloat16),
        grid_spec=pltpu.PrefetchScalarGridSpec(
            num_scalar_prefetch=0,
            grid=(n_tiles,),
            in_specs=[
                # main lane tile for this grid step
                pl.BlockSpec((Cin, ts), lambda t: (0, t)),
                # right-halo lanes: the halo_ts lanes immediately after tile t
                pl.BlockSpec((Cin, halo_ts), lambda t: (0, (t + 1) * ratio)),
                # grid-invariant operands: constant index_map -> fetched once
                pl.BlockSpec((Cout, KK), lambda t: (0, 0)),
                pl.BlockSpec((Cout, 1), lambda t: (0, 0)),
                pl.BlockSpec((Cout, 1), lambda t: (0, 0)),
            ],
            # lane-dense (Cout, ts) bf16 output block -> unmasked full-vreg stores
            out_specs=pl.BlockSpec((Cout, ts), lambda t: (0, t)),
        ),
        compiler_params=pltpu.CompilerParams(
            # TODO(synk): if the lane-tile grid does not split across v7x's two
            # TensorCores, switch this axis to pltpu.CORE_PARALLEL.
            dimension_semantics=("parallel",),
            vmem_limit_bytes=vmem_limit,
        ),
    )(xf, xf, w_flat, g2, b2)

    # Epilogue in bf16 (slice valid padded-grid positions, subsample by
    # stride, transpose); cast to f32 only at the very end.
    # TODO(synk): for stride > 1 this computes stride^2 extra positions; a
    # stride-aware lane layout would avoid that.
    y = y_flat[:, :L].reshape(Cout, B, Hp, Wp)
    y = y[:, :, :(Ho - 1) * stride + 1:stride, :(Wo - 1) * stride + 1:stride]
    return y.transpose(1, 0, 2, 3).astype(jnp.float32)   # (B, Cout, Ho, Wo)


# ---------------------------------------------------------------------------
# Pure-JAX reference (mirrors the PyTorch module) for a sanity check
# ---------------------------------------------------------------------------
def _reference(x, weight, gamma, beta, *, stride, padding, norm, activation, eps):
    y = jax.lax.conv_general_dilated(
        x, weight, window_strides=(stride, stride),
        padding=[(padding, padding), (padding, padding)],
        dimension_numbers=("NCHW", "OIHW", "NCHW"),
        precision=jax.lax.Precision.HIGHEST,
    )
    if norm == "LN":
        u = jnp.mean(y, axis=1, keepdims=True)
        s = jnp.mean((y - u) ** 2, axis=1, keepdims=True)
        y = (y - u) / jnp.sqrt(s + eps)
        y = gamma[None, :, None, None] * y + beta[None, :, None, None]
    if activation == "relu":
        y = jnp.maximum(y, 0.0)
    return y


if __name__ == "__main__":
    # Conv2dBlock(input_dim=4, output_dim=8, kernel_size=3, stride=1,
    #             padding=1, norm='LN', activation='relu', pad_type='zero')
    B, Cin, H, W = 2, 4, 16, 16
    Cout, kh, kw = 8, 3, 3
    stride, padding = 1, 1

    key = jax.random.PRNGKey(0)
    kx, kw_ = jax.random.split(key)
    x = jax.random.normal(kx, (B, Cin, H, W), dtype=jnp.float32)
    weight = jax.random.normal(kw_, (Cout, Cin, kh, kw), dtype=jnp.float32) * 0.1
    gamma = jnp.ones((Cout,), dtype=jnp.float32)   # LayerNorm weight init
    beta = jnp.zeros((Cout,), dtype=jnp.float32)   # LayerNorm bias init

    fwd = jax.jit(functools.partial(
        conv2d_block_forward, stride=stride, padding=padding,
        norm="LN", activation="relu"))
    out = jax.block_until_ready(fwd(x, weight, gamma, beta))
    assert out.shape == (B, Cout, H, W), out.shape

    # Reference on bf16-rounded inputs (the kernel streams x / w in bf16 with
    # f32 accumulation and stores the output in bf16); LN math in f32.
    xq = x.astype(jnp.bfloat16).astype(jnp.float32)
    wq = weight.astype(jnp.bfloat16).astype(jnp.float32)
    ref = _reference(xq, wq, gamma, beta, stride=stride, padding=padding,
                     norm="LN", activation="relu", eps=1e-6)
    err = float(jnp.max(jnp.abs(out - ref)))
    if err > 3e-2:   # bf16 output store contributes ~1e-2 at |y|~4
        raise AssertionError(f"mismatch vs reference: max abs err {err}")

    print("KERNEL_OK")
</pallas_src>

<mosaic_0001>
module attributes {stable_mosaic.version = 11 : i64} {
  func.func @_conv_ln_act_kernel(%arg0: i32, %arg1: memref<4x128xbf16, #tpu.memory_space<vmem>>, %arg2: memref<4x128xbf16, #tpu.memory_space<vmem>>, %arg3: memref<8x36xbf16, #tpu.memory_space<vmem>>, %arg4: memref<8x1xf32, #tpu.memory_space<vmem>>, %arg5: memref<8x1xf32, #tpu.memory_space<vmem>>, %arg6: memref<8x128xbf16, #tpu.memory_space<vmem>>) attributes {dimension_semantics = [#tpu.dimension_semantics<parallel>], iteration_bounds = array<i64: 6>, scalar_prefetch = 0 : i64, scratch_operands = 0 : i64, tpu.core_type = #tpu.core_type<tc>, window_params = [{transform_indices = @transform_0, window_bounds = array<i64: 4, 128>}, {transform_indices = @transform_1, window_bounds = array<i64: 4, 128>}, {pipeline_mode = #tpu.pipeline_mode<synchronous>, transform_indices = @transform_2, window_bounds = array<i64: 8, 36>}, {pipeline_mode = #tpu.pipeline_mode<synchronous>, transform_indices = @transform_3, window_bounds = array<i64: 8, 1>}, {pipeline_mode = #tpu.pipeline_mode<synchronous>, transform_indices = @transform_4, window_bounds = array<i64: 8, 1>}, {transform_indices = @transform_5, window_bounds = array<i64: 8, 128>}]} {
    %c0 = arith.constant 0 : index
    %c0_0 = arith.constant 0 : index
    %0 = vector.load %arg1[%c0, %c0_0] : memref<4x128xbf16, #tpu.memory_space<vmem>>, vector<4x128xbf16>
    %c0_1 = arith.constant 0 : index
    %c0_2 = arith.constant 0 : index
    %1 = vector.load %arg2[%c0_1, %c0_2] : memref<4x128xbf16, #tpu.memory_space<vmem>>, vector<4x128xbf16>
    %2 = tpu.concatenate %0, %1 in 1 : vector<4x128xbf16>, vector<4x128xbf16> -> vector<4x256xbf16>
    %3 = vector.extract_strided_slice %2 {offsets = [0, 0], sizes = [4, 128], strides = [1, 1]} : vector<4x256xbf16> to vector<4x128xbf16>
    %4 = vector.extract_strided_slice %2 {offsets = [0, 1], sizes = [4, 128], strides = [1, 1]} : vector<4x256xbf16> to vector<4x128xbf16>
    %5 = vector.extract_strided_slice %2 {offsets = [0, 2], sizes = [4, 128], strides = [1, 1]} : vector<4x256xbf16> to vector<4x128xbf16>
    %6 = vector.extract_strided_slice %2 {offsets = [0, 18], sizes = [4, 128], strides = [1, 1]} : vector<4x256xbf16> to vector<4x128xbf16>
    %7 = vector.extract_strided_slice %2 {offsets = [0, 19], sizes = [4, 128], strides = [1, 1]} : vector<4x256xbf16> to vector<4x128xbf16>
    %8 = vector.extract_strided_slice %2 {offsets = [0, 20], sizes = [4, 128], strides = [1, 1]} : vector<4x256xbf16> to vector<4x128xbf16>
    %9 = vector.extract_strided_slice %2 {offsets = [0, 36], sizes = [4, 128], strides = [1, 1]} : vector<4x256xbf16> to vector<4x128xbf16>
    %10 = vector.extract_strided_slice %2 {offsets = [0, 37], sizes = [4, 128], strides = [1, 1]} : vector<4x256xbf16> to vector<4x128xbf16>
    %11 = vector.extract_strided_slice %2 {offsets = [0, 38], sizes = [4, 128], strides = [1, 1]} : vector<4x256xbf16> to vector<4x128xbf16>
    %12 = tpu.concatenate %3, %4, %5, %6, %7, %8, %9, %10, %11 in 0 : vector<4x128xbf16>, vector<4x128xbf16>, vector<4x128xbf16>, vector<4x128xbf16>, vector<4x128xbf16>, vector<4x128xbf16>, vector<4x128xbf16>, vector<4x128xbf16>, vector<4x128xbf16> -> vector<36x128xbf16>
    %c0_3 = arith.constant 0 : index
    %c0_4 = arith.constant 0 : index
    %13 = vector.load %arg3[%c0_3, %c0_4] : memref<8x36xbf16, #tpu.memory_space<vmem>>, vector<8x36xbf16>
    %cst = arith.constant dense<0.000000e+00> : vector<8x128xf32>
    %14 = tpu.matmul %13, %12, %cst {dimension_numbers = #tpu.dot_dimension_numbers<[1], [0], [0], [1], [0, 0, 1, 1], [], []>} : vector<8x36xbf16>, vector<36x128xbf16>, vector<8x128xf32> -> vector<8x128xf32>
    %cst_5 = arith.constant dense<0.000000e+00> : vector<128xf32>
    %15 = vector.multi_reduction <add>, %14, %cst_5 [0] : vector<8x128xf32> to vector<128xf32>
    %16 = vector.shape_cast %15 : vector<128xf32> to vector<1x128xf32>
    %cst_6 = arith.constant 8.000000e+00 : f32
    %17 = vector.broadcast %cst_6 : f32 to vector<1x128xf32>
    %18 = arith.divf %16, %17 : vector<1x128xf32>
    %19 = vector.broadcast %18 : vector<1x128xf32> to vector<8x128xf32>
    %20 = arith.subf %14, %19 : vector<8x128xf32>
    %21 = arith.mulf %20, %20 : vector<8x128xf32>
    %cst_7 = arith.constant dense<0.000000e+00> : vector<128xf32>
    %22 = vector.multi_reduction <add>, %21, %cst_7 [0] : vector<8x128xf32> to vector<128xf32>
    %23 = vector.shape_cast %22 : vector<128xf32> to vector<1x128xf32>
    %cst_8 = arith.constant 8.000000e+00 : f32
    %24 = vector.broadcast %cst_8 : f32 to vector<1x128xf32>
    %25 = arith.divf %23, %24 : vector<1x128xf32>
    %cst_9 = arith.constant 9.99999997E-7 : f32
    %26 = vector.broadcast %cst_9 : f32 to vector<1x128xf32>
    %27 = arith.addf %25, %26 : vector<1x128xf32>
    %28 = math.rsqrt %27 : vector<1x128xf32>
    %29 = vector.broadcast %28 : vector<1x128xf32> to vector<8x128xf32>
    %30 = arith.mulf %20, %29 : vector<8x128xf32>
    %c0_10 = arith.constant 0 : index
    %c0_11 = arith.constant 0 : index
    %31 = vector.load %arg4[%c0_10, %c0_11] : memref<8x1xf32, #tpu.memory_space<vmem>>, vector<8x1xf32>
    %32 = vector.broadcast %31 : vector<8x1xf32> to vector<8x128xf32>
    %33 = arith.mulf %30, %32 : vector<8x128xf32>
    %c0_12 = arith.constant 0 : index
    %c0_13 = arith.constant 0 : index
    %34 = vector.load %arg5[%c0_12, %c0_13] : memref<8x1xf32, #tpu.memory_space<vmem>>, vector<8x1xf32>
    %35 = vector.broadcast %34 : vector<8x1xf32> to vector<8x128xf32>
    %36 = arith.addf %33, %35 : vector<8x128xf32>
    %cst_14 = arith.constant 0.000000e+00 : f32
    %37 = vector.broadcast %cst_14 : f32 to vector<8x128xf32>
    %38 = arith.maximumf %36, %37 : vector<8x128xf32>
    %39 = arith.truncf %38 : vector<8x128xf32> to vector<8x128xbf16>
    %c0_15 = arith.constant 0 : index
    %c0_16 = arith.constant 0 : index
    %40 = vector.load %arg6[%c0_15, %c0_16] : memref<8x128xbf16, #tpu.memory_space<vmem>>, vector<8x128xbf16>
    tpu.vector_store %arg6[%c0_15, %c0_16], %39 {strides = array<i32>} : memref<8x128xbf16, #tpu.memory_space<vmem>>, vector<8x128xbf16>,
    return
  }
  func.func @transform_0(%arg0: i32) -> (i32, i32) {
    %c0_i32 = arith.constant 0 : i32
    %c0_i32_0 = arith.constant 0 : i32
    return %c0_i32, %arg0 : i32, i32
  }
  func.func @transform_1(%arg0: i32) -> (i32, i32) {
    %c1_i32 = arith.constant 1 : i32
    %0 = arith.addi %arg0, %c1_i32 : i32
    %c1_i32_0 = arith.constant 1 : i32
    %1 = arith.muli %0, %c1_i32_0 : i32
    %c0_i32 = arith.constant 0 : i32
    %c0_i32_1 = arith.constant 0 : i32
    return %c0_i32, %1 : i32, i32
  }
  func.func @transform_2(%arg0: i32) -> (i32, i32) {
    %c0_i32 = arith.constant 0 : i32
    %c0_i32_0 = arith.constant 0 : i32
    %c0_i32_1 = arith.constant 0 : i32
    return %c0_i32, %c0_i32_0 : i32, i32
  }
  func.func @transform_3(%arg0: i32) -> (i32, i32) {
    %c0_i32 = arith.constant 0 : i32
    %c0_i32_0 = arith.constant 0 : i32
    %c0_i32_1 = arith.constant 0 : i32
    return %c0_i32, %c0_i32_0 : i32, i32
  }
  func.func @transform_4(%arg0: i32) -> (i32, i32) {
    %c0_i32 = arith.constant 0 : i32
    %c0_i32_0 = arith.constant 0 : i32
    %c0_i32_1 = arith.constant 0 : i32
    return %c0_i32, %c0_i32_0 : i32, i32
  }
  func.func @transform_5(%arg0: i32) -> (i32, i32) {
    %c0_i32 = arith.constant 0 : i32
    %c0_i32_0 = arith.constant 0 : i32
    return %c0_i32, %arg0 : i32, i32
  }
}

</mosaic_0001>

<llo_original>
// kernel: conv2d_block_forward.1
$region0: #{conv2d_block_forward.1}
  #allocation0 [shape = 'u32[]', space=smem, size = 0x4, offset = 0x4, fixed_abs, tag = 'smem constant byte address 0x4 - core index']
  #allocation1 [shape = 'u32[144,128]{1,0:T(1,128)}', space=vmem, size = 0x12000, scoped, tag = 'internal scratch']
  %s0 = inlined_call_operand.vmem [shape: bf16[4,896], index: 0, kind: input, shape index: {}, may-alias: {0,1}]
  %s1 = inlined_call_operand.vmem [shape: bf16[4,896], index: 1, kind: input, shape index: {}, may-alias: {0,1}]
  %s2 = inlined_call_operand.vmem [shape: bf16[8,36], index: 2, kind: input, shape index: {}]
  %s3 = inlined_call_operand.vmem [shape: f32[8,1], index: 3, kind: input, shape index: {}]
  %s4 = inlined_call_operand.vmem [shape: f32[8,1], index: 4, kind: input, shape index: {}]
  %s5 = inlined_call_operand.vmem [shape: bf16[8,768], index: 5, kind: output, shape index: {}]
  %s6 = sld [smem:[#allocation0]]
  $region53: #{conv2d_block_forward.1} parent=0
    _
  %s8 = ssub.s32 1, %s6
  %s9 = scalar_select 0, %s8, %s6
  loop: start=0, step=1, limit=8
  $region2: #{conv2d_block_forward.1} parent=0 // loop_pre_header
    _
  $region3: #{conv2d_block_forward.1} parent=0 // loop_header
    %s11 = sphi 0, %s15
    %p12 = scmp.ge.s32.totalorder %s11, 8
    %s21 = sphi 0, %s23
    %s24 = sphi 0, %s21
    %s25 = sphi 0, %s24
    %s41 = sphi 0, %s25
    %s49 = sphi 0, %s51
    %s52 = sphi 0, %s49
    %s53 = sphi 0, %s52
    %s69 = sphi 0, %s53
    %s73 = sphi 0, %s73
    %s75 = sphi 0, %s73
    %s76 = sphi 0, %s75
    %s90 = sphi 0, %s76
    %s94 = sphi 0, %s94
    %s96 = sphi 0, %s94
    %s97 = sphi 0, %s96
    %s111 = sphi 0, %s97
    %s115 = sphi 0, %s115
    %s117 = sphi 0, %s115
    %s118 = sphi 0, %s117
    %s132 = sphi 0, %s118
    %s138 = sphi 0, %s140
    %s141 = sphi 0, %s138
    %s142 = sphi 0, %s141
    %s158 = sphi 0, %s142
  $region4: #{conv2d_block_forward.1} parent=0 // loop_header_branch
    %14 = sbr.rel (%p12) target = $region8
  $region5: #{conv2d_block_forward.1} parent=0 // loop_body
    %s16 = ssub.s32 %s11, 1
    %s17 = ssub.s32 %s11, 2
    %s18 = sadd.s32 %s11, 1
    %s19 = ssub.s32 %s11, %s18
    %p20 = scmp.eq.s32.totalorder %s19, 0
    %s22 = sadd.s32 %s21, 1
    %s23 = scalar_select %p20, %s21, %s22
    %p26 = pneg %p20
    %p27 = scmp.eq.s32.totalorder %s11, 5
    %p28 = por %p26, %p27
    %p29 = scmp.ne.s32.totalorder %s21, %s24
    %p30 = scmp.eq.s32.totalorder %s11, 0
    %p31 = por %p29, %p30
    %p32 = scmp.ne.s32.totalorder %s21, %s24
    %p33 = scmp.eq.s32.totalorder %s16, 5
    %p34 = por %p32, %p33
    %p35 = scmp.ne.s32.totalorder %s24, %s25
    %p36 = scmp.eq.s32.totalorder %s16, 0
    %p37 = por %p35, %p36
    %p38 = scmp.ne.s32.totalorder %s24, %s25
    %p39 = scmp.eq.s32.totalorder %s17, 5
    %p40 = por %p38, %p39
    %p42 = scmp.ne.s32.totalorder %s25, %s41
    %p43 = scmp.eq.s32.totalorder %s17, 0
    %p44 = por %p42, %p43
    %s45 = sadd.s32 %s11, 1
    %s46 = sadd.s32 %s18, 1
    %s47 = ssub.s32 %s45, %s46
    %p48 = scmp.eq.s32.totalorder %s47, 0
    %s50 = sadd.s32 %s49, 1
    %s51 = scalar_select %p48, %s49, %s50
    %p54 = pneg %p48
    %p55 = scmp.eq.s32.totalorder %s11, 5
    %p56 = por %p54, %p55
    %p57 = scmp.ne.s32.totalorder %s49, %s52
    %p58 = scmp.eq.s32.totalorder %s11, 0
    %p59 = por %p57, %p58
    %p60 = scmp.ne.s32.totalorder %s49, %s52
    %p61 = scmp.eq.s32.totalorder %s16, 5
    %p62 = por %p60, %p61
    %p63 = scmp.ne.s32.totalorder %s52, %s53
    %p64 = scmp.eq.s32.totalorder %s16, 0
    %p65 = por %p63, %p64
    %p66 = scmp.ne.s32.totalorder %s52, %s53
    %p67 = scmp.eq.s32.totalorder %s17, 5
    %p68 = por %p66, %p67
    %p70 = scmp.ne.s32.totalorder %s53, %s69
    %p71 = scmp.eq.s32.totalorder %s17, 0
    %p72 = por %p70, %p71
    %s74 = sadd.s32 %s73, 1
    %p77 = scmp.eq.s32.totalorder %s11, 5
    %p78 = scmp.ne.s32.totalorder %s73, %s75
    %p79 = scmp.eq.s32.totalorder %s11, 0
    %p80 = por %p78, %p79
    %p81 = scmp.ne.s32.totalorder %s73, %s75
    %p82 = scmp.eq.s32.totalorder %s16, 5
    %p83 = por %p81, %p82
    %p84 = scmp.ne.s32.totalorder %s75, %s76
    %p85 = scmp.eq.s32.totalorder %s16, 0
    %p86 = por %p84, %p85
    %p87 = scmp.ne.s32.totalorder %s75, %s76
    %p88 = scmp.eq.s32.totalorder %s17, 5
    %p89 = por %p87, %p88
    %p91 = scmp.ne.s32.totalorder %s76, %s90
    %p92 = scmp.eq.s32.totalorder %s17, 0
    %p93 = por %p91, %p92
    %s95 = sadd.s32 %s94, 1
    %p98 = scmp.eq.s32.totalorder %s11, 5
    %p99 = scmp.ne.s32.totalorder %s94, %s96
    %p100 = scmp.eq.s32.totalorder %s11, 0
    %p101 = por %p99, %p100
    %p102 = scmp.ne.s32.totalorder %s94, %s96
    %p103 = scmp.eq.s32.totalorder %s16, 5
    %p104 = por %p102, %p103
    %p105 = scmp.ne.s32.totalorder %s96, %s97
    %p106 = scmp.eq.s32.totalorder %s16, 0
    %p107 = por %p105, %p106
    %p108 = scmp.ne.s32.totalorder %s96, %s97
    %p109 = scmp.eq.s32.totalorder %s17, 5
    %p110 = por %p108, %p109
    %p112 = scmp.ne.s32.totalorder %s97, %s111
    %p113 = scmp.eq.s32.totalorder %s17, 0
    %p114 = por %p112, %p113
    %s116 = sadd.s32 %s115, 1
    %p119 = scmp.eq.s32.totalorder %s11, 5
    %p120 = scmp.ne.s32.totalorder %s115, %s117
    %p121 = scmp.eq.s32.totalorder %s11, 0
    %p122 = por %p120, %p121
    %p123 = scmp.ne.s32.totalorder %s115, %s117
    %p124 = scmp.eq.s32.totalorder %s16, 5
    %p125 = por %p123, %p124
    %p126 = scmp.ne.s32.totalorder %s117, %s118
    %p127 = scmp.eq.s32.totalorder %s16, 0
    %p128 = por %p126, %p127
    %p129 = scmp.ne.s32.totalorder %s117, %s118
    %p130 = scmp.eq.s32.totalorder %s17, 5
    %p131 = por %p129, %p130
    %p133 = scmp.ne.s32.totalorder %s118, %s132
    %p134 = scmp.eq.s32.totalorder %s17, 0
    %p135 = por %p133, %p134
    %s136 = ssub.s32 %s11, %s18
    %p137 = scmp.eq.s32.totalorder %s136, 0
    %s139 = sadd.s32 %s138, 1
    %s140 = scalar_select %p137, %s138, %s139
    %p143 = pneg %p137
    %p144 = scmp.eq.s32.totalorder %s11, 5
    %p145 = por %p143, %p144
    %p146 = scmp.ne.s32.totalorder %s138, %s141
    %p147 = scmp.eq.s32.totalorder %s11, 0
    %p148 = por %p146, %p147
    %p149 = scmp.ne.s32.totalorder %s138, %s141
    %p150 = scmp.eq.s32.totalorder %s16, 5
    %p151 = por %p149, %p150
    %p152 = scmp.ne.s32.totalorder %s141, %s142
    %p153 = scmp.eq.s32.totalorder %s16, 0
    %p154 = por %p152, %p153
    %p155 = scmp.ne.s32.totalorder %s141, %s142
    %p156 = scmp.eq.s32.totalorder %s17, 5
    %p157 = por %p155, %p156
    %p159 = scmp.ne.s32.totalorder %s142, %s158
    %p160 = scmp.eq.s32.totalorder %s17, 0
    %p161 = por %p159, %p160
    %p162 = scmp.le.s32.totalorder 1, %s11
    %p163 = scmp.lt.s32.totalorder %s11, 7
    %p164 = pnand %p162, %p163
    %p165 = pneg %p164
    // Predicated region
    $region9: #{conv2d_block_forward.1} parent=5 // pred_check
      _
    $region10: #{conv2d_block_forward.1} parent=5 // pred_check_branch
      %167 = sbr.rel (%p164) target = $region12
    $region11: #{conv2d_block_forward.1} parent=5 // pred_region
      %s168 = ssub.s32 %s11, 1
      // Predicated region
      $region13: #{conv2d_block_forward.1} parent=11 // pred_check
        %p169 = pneg %p86
      $region14: #{conv2d_block_forward.1} parent=11 // pred_check_branch
        %171 = sbr.rel (%p169) target = $region16
      $region15: #{conv2d_block_forward.1} parent=11 // pred_region
        _
      $region16: #{conv2d_block_forward.1} parent=11 // pred_fallthru
        _
      // Predicated region
      $region17: #{conv2d_block_forward.1} parent=11 // pred_check
        %p172 = pneg %p107
      $region18: #{conv2d_block_forward.1} parent=11 // pred_check_branch
        %174 = sbr.rel (%p172) target = $region20
      $region19: #{conv2d_block_forward.1} parent=11 // pred_region
        _
      $region20: #{conv2d_block_forward.1} parent=11 // pred_fallthru
        _
      // Predicated region
      $region21: #{conv2d_block_forward.1} parent=11 // pred_check
        %p175 = pneg %p128
      $region22: #{conv2d_block_forward.1} parent=11 // pred_check_branch
        %177 = sbr.rel (%p175) target = $region24
      $region23: #{conv2d_block_forward.1} parent=11 // pred_region
        _
      $region24: #{conv2d_block_forward.1} parent=11 // pred_fallthru
        _
    $region12: #{conv2d_block_forward.1} parent=5 // pred_fallthru
      _
    %p178 = scmp.lt.s32.totalorder %s11, 6
    // Predicated region
    $region25: #{conv2d_block_forward.1} parent=5 // pred_check
      %p179 = pneg %p178
    $region26: #{conv2d_block_forward.1} parent=5 // pred_check_branch
      %181 = sbr.rel (%p179) target = $region28
    $region27: #{conv2d_block_forward.1} parent=5 // pred_region
      // Predicated region
      $region29: #{conv2d_block_forward.1} parent=27 // pred_check
        %p182 = pneg %p31
      $region30: #{conv2d_block_forward.1} parent=27 // pred_check_branch
        %184 = sbr.rel (%p182) target = $region32
      $region31: #{conv2d_block_forward.1} parent=27 // pred_region
        %p185 = scmp.lt.s32.totalorder %s11, 6
        %s186 = scalar_select %p185, %s11, 6
        %s187 = smul.addr %s186, 2
        %s188 = scalar_lea.vmem %s0, %s187
      $region32: #{conv2d_block_forward.1} parent=27 // pred_fallthru
        _
      // Predicated region
      $region33: #{conv2d_block_forward.1} parent=27 // pred_check
        %p189 = pneg %p59
      $region34: #{conv2d_block_forward.1} parent=27 // pred_check_branch
        %191 = sbr.rel (%p189) target = $region36
      $region35: #{conv2d_block_forward.1} parent=27 // pred_region
        %s192 = sadd.s32 %s11, 1
        %p193 = scmp.lt.s32.totalorder %s192, 6
        %s194 = scalar_select %p193, %s192, 6
        %s195 = smul.addr %s194, 2
        %s196 = scalar_lea.vmem %s1, %s195
        %s197 = sadd.s32 %s11, 1
      $region36: #{conv2d_block_forward.1} parent=27 // pred_fallthru
        _
    $region28: #{conv2d_block_forward.1} parent=5 // pred_fallthru
      _
    %p198 = scmp.le.s32.totalorder 1, %s11
    %p199 = scmp.lt.s32.totalorder %s11, 7
    %p200 = pnand %p198, %p199
    %p201 = pneg %p200
    // Predicated region
    $region37: #{conv2d_block_forward.1} parent=5 // pred_check
      _
    $region38: #{conv2d_block_forward.1} parent=5 // pred_check_branch
      %203 = sbr.rel (%p200) target = $region40
    $region39: #{conv2d_block_forward.1} parent=5 // pred_region
      %s204 = ssub.s32 %s11, 1
      %p205 = scmp.lt.s32.totalorder %s16, 6
      %s206 = scalar_select %p205, %s16, 6
      %s207 = smul.addr %s206, 2
      %s208 = scalar_lea.vmem %s0, %s207
      %p209 = pneg %p37
      %p210 = pneg %p34
      %s211 = sadd.s32 %s16, 1
      %p212 = scmp.lt.s32.totalorder %s211, 6
      %s213 = scalar_select %p212, %s211, 6
      %s214 = smul.addr %s213, 2
      %s215 = scalar_lea.vmem %s1, %s214
      %p216 = pneg %p65
      %p217 = pneg %p62
      %p218 = pneg %p86
      %p219 = pneg %p83
      %p220 = pneg %p107
      %p221 = pneg %p104
      %p222 = pneg %p128
      %p223 = pneg %p125
      %p224 = pneg %p154
      %p225 = pneg %p151
      %p226 = scmp.lt.s32.totalorder %s16, 5
      %s227 = scalar_select %p226, %s16, 5
      %s228 = smul.addr %s227, 4
      %s229 = scalar_lea.vmem %s5, %s228
      %p230 = scmp.lt.s32.totalorder %s16, 6
      %s231 = scalar_select %p230, %s16, 6
      %s232 = smul.addr %s231, 2
      %s233 = scalar_lea.vmem %s0, %s232
      %s234 = sadd.s32 %s16, 1
      %p235 = scmp.lt.s32.totalorder %s234, 6
      %s236 = scalar_select %p235, %s234, 6
      %s237 = smul.addr %s236, 2
      %s238 = scalar_lea.vmem %s1, %s237
      %s239 = sadd.s32 %s16, 1
      %p240 = scmp.lt.s32.totalorder %s16, 5
      %s241 = scalar_select %p240, %s16, 5
      %s242 = smul.addr %s241, 4
      %s243 = scalar_lea.vmem %s5, %s242
      %v245 = vld [vmem:[%s233] sm:$0x3]
      %v246 = vld [vmem:[%s238] sm:$0x3]
      %v249 = vrot.slane %v245, 6
      %v250 = vrot.slane %v246, 6
      %251 = vrot.lane.b32.xlu0 %v249, 127
      %v252 = vpop.permute.xlu0 %251
      %253 = vrot.lane.b32.xlu0 %v250, 127
      %v254 = vpop.permute.xlu0 %253
      %vm255 = vcmask 1039360
      %v256 = vsel %vm255, %v252, %v254
      %v257 = vrot.slane %v245, 4
      %v258 = vrot.slane %v246, 4
      %259 = vrot.lane.b32.xlu0 %v257, 126
      %v260 = vpop.permute.xlu0 %259
      %261 = vrot.lane.b32.xlu0 %v258, 126
      %v262 = vpop.permute.xlu0 %261
      %vm263 = vcmask 1031168
      %v264 = vsel %vm263, %v260, %v262
      %v265 = vrot.slane %v245, 2
      %v266 = vrot.slane %v246, 2
      %267 = vrot.lane.b32.xlu0 %v265, 110
      %v268 = vpop.permute.xlu0 %267
      %269 = vrot.lane.b32.xlu0 %v266, 110
      %v270 = vpop.permute.xlu0 %269
      %vm271 = vcmask 900096
      %v272 = vsel %vm271, %v268, %v270
      %273 = vrot.lane.b32.xlu0 %v245, 109
      %v274 = vpop.permute.xlu0 %273
      %275 = vrot.lane.b32.xlu0 %v246, 109
      %v276 = vpop.permute.xlu0 %275
      %vm277 = vcmask 891904
      %v278 = vsel %vm277, %v274, %v276
      %279 = vrot.lane.b32.xlu0 %v249, 108
      %v280 = vpop.permute.xlu0 %279
      %281 = vrot.lane.b32.xlu0 %v250, 108
      %v282 = vpop.permute.xlu0 %281
      %vm283 = vcmask 883712
      %v284 = vsel %vm283, %v280, %v282
      %285 = vrot.lane.b32.xlu0 %v257, 92
      %v286 = vpop.permute.xlu0 %285
      %287 = vrot.lane.b32.xlu0 %v258, 92
      %v288 = vpop.permute.xlu0 %287
      %vm289 = vcmask 752640
      %v290 = vsel %vm289, %v286, %v288
      %291 = vrot.lane.b32.xlu0 %v265, 91
      %v292 = vpop.permute.xlu0 %291
      %293 = vrot.lane.b32.xlu0 %v266, 91
      %v294 = vpop.permute.xlu0 %293
      %vm295 = vcmask 744448
      %v296 = vsel %vm295, %v292, %v294
      %297 = vrot.lane.b32.xlu0 %v245, 90
      %v298 = vpop.permute.xlu0 %297
      %299 = vrot.lane.b32.xlu0 %v246, 90
      %v300 = vpop.permute.xlu0 %299
      %vm301 = vcmask 736256
      %v302 = vsel %vm301, %v298, %v300
      %vm303 = vcmask 1041408
      %v306 = vsel %vm303, %v245, %v256
      %vm307 = vcmask 1043456
      %v309 = vsel %vm307, %v306, %v264
      %vm310 = vcmask 1045504
      %v312 = vsel %vm310, %v309, %v272
      %v316 = vsel %vm303, %v278, %v284
      %v318 = vsel %vm307, %v316, %v290
      %v320 = vsel %vm310, %v318, %v296
      %v322 = vld [vmem:[%s2] sm:$0xf]
      %vm323 = vcmask 293888
      %v325 = vsel %vm323, %v322, 0
      %v328 = vsel %vm303, %v302, 0
      %330 = vmatprep.subr.bf16.mxu0 0
      %331 = vmatpush1.bf16.msra.mxu0 %v312
      %332 = vmatprep.subr.bf16.mxu0 0
      %333 = vmatpush1.bf16.msra.mxu0 %v320
      %334 = vmatprep.subr.bf16.mxu0 0
      %335 = vmatpush1.bf16.msra.mxu0 %v328
      %336 = vmatprep.subr.bf16.mxu0 0
      %337 = vmatpush1.bf16.msra.mxu0 0
      %338 = vmatprep.subr.bf16.mxu0 0
      %339 = vmatpush1.bf16.msra.mxu0 0
      %340 = vmatprep.subr.bf16.mxu0 0
      %341 = vmatpush1.bf16.msra.mxu0 0
      %342 = vmatprep.subr.bf16.mxu0 0
      %343 = vmatpush1.bf16.msra.mxu0 0
      %344 = vmatprep.subr.bf16.mxu0 0
      %345 = vmatpush1.bf16.msra.mxu0 0
      %346 = vmatprep.subr.bf16.mxu0 0
      %347 = vmatpush1.bf16.msra.mxu0 0
      %348 = vmatprep.subr.bf16.mxu0 0
      %349 = vmatpush1.bf16.msra.mxu0 0
      %350 = vmatprep.subr.bf16.mxu0 0
      %351 = vmatpush1.bf16.msra.mxu0 0
      %352 = vmatprep.subr.bf16.mxu0 0
      %353 = vmatpush1.bf16.msra.mxu0 0
      %354 = vmatprep.subr.bf16.mxu0 0
      %355 = vmatpush1.bf16.msra.mxu0 0
      %356 = vmatprep.subr.bf16.mxu0 0
      %357 = vmatpush1.bf16.msra.mxu0 0
      %358 = vmatprep.subr.bf16.mxu0 0
      %359 = vmatpush1.bf16.msra.mxu0 0
      %360 = vmatprep.subr.bf16.mxu0 0
      %361 = vmatpush1.bf16.msra.mxu0 0
      %362 = vmatprep.mubr.bf16.mxu0 0
      %363 = vmatmul.mubr.bf16.gmra.mrb[0].mxu0 %v325
      %v364 = vpop.f32.mrb[0].mxu0
      %v365 = vadd.f32 0.0, %v364
      %v366 = vpop.f32.mrb[0].mxu0
      %v367 = vpop.f32.mrb[0].mxu0
      %v368 = vpop.f32.mrb[0].mxu0
      %369 = vdwg.mxu0
      %v370 = vrot.slane %v365, 4
      %v371 = vadd.f32 %v365, %v370
      %v372 = vrot.slane %v371, 2
      %v373 = vadd.f32 %v371, %v372
      %v374 = vrot.slane %v373, 1
      %v375 = vadd.f32 %v373, %v374
      %v376 = vrcp.pop 8.0
      %v377 = vmul.f32 %v375, %v376
      %v378 = vsub.f32 %v365, %v377
      %v379 = vmul.f32 %v378, %v378
      %v380 = vrot.slane %v379, 4
      %v381 = vadd.f32 %v379, %v380
      %v382 = vrot.slane %v381, 2
      %v383 = vadd.f32 %v381, %v382
      %v384 = vrot.slane %v383, 1
      %v385 = vadd.f32 %v383, %v384
      %v386 = vmul.f32 %v385, %v376
      %v387 = vadd.f32 %v386, 1e-06
      %v388 = vrsqrt.pop %v387
      %v389 = vmul.f32 %v378, %v388
      %v390 = vld [vmem:[%s3] sm:$0xff]
      %392 = vset.pattern.permute.xlu0 0
      %393 = vperm.xlu0 %392, %v390
      %v394 = vpop.permute.xlu0 %393
      %v396 = vmul.f32 %v389, %v394
      %v397 = vld [vmem:[%s4] sm:$0xff]
      %399 = vset.pattern.permute.xlu0 0
      %400 = vperm.xlu0 %399, %v397
      %v401 = vpop.permute.xlu0 %400
      %v403 = vadd.f32 %v396, %v401
      %v404 = vmax.f32 %v403, 0.0
      %v405 = vpack.c.bf16 %v404, %v404
      %406 = vst [vmem:[%s243] sm:$0xf] %v405
      %p407 = scmp.lt.s32.totalorder %s16, 5
      %s408 = scalar_select %p407, %s16, 5
      %s409 = smul.addr %s408, 4
      %s410 = scalar_lea.vmem %s5, %s409
      // Predicated region
      $region41: #{conv2d_block_forward.1} parent=39 // pred_check
        %p411 = pneg %p151
      $region42: #{conv2d_block_forward.1} parent=39 // pred_check_branch
        %413 = sbr.rel (%p411) target = $region44
      $region43: #{conv2d_block_forward.1} parent=39 // pred_region
        _
      $region44: #{conv2d_block_forward.1} parent=39 // pred_fallthru
        _
    $region40: #{conv2d_block_forward.1} parent=5 // pred_fallthru
      _
    %p414 = scmp.le.s32.totalorder 2, %s11
    // Predicated region
    $region45: #{conv2d_block_forward.1} parent=5 // pred_check
      %p415 = pneg %p414
    $region46: #{conv2d_block_forward.1} parent=5 // pred_check_branch
      %417 = sbr.rel (%p415) target = $region48
    $region47: #{conv2d_block_forward.1} parent=5 // pred_region
      %s418 = ssub.s32 %s11, 2
      // Predicated region
      $region49: #{conv2d_block_forward.1} parent=47 // pred_check
        %p419 = pneg %p157
      $region50: #{conv2d_block_forward.1} parent=47 // pred_check_branch
        %421 = sbr.rel (%p419) target = $region52
      $region51: #{conv2d_block_forward.1} parent=47 // pred_region
        %p422 = scmp.lt.s32.totalorder %s17, 5
        %s423 = scalar_select %p422, %s17, 5
        %s424 = smul.addr %s423, 4
        %s425 = scalar_lea.vmem %s5, %s424
      $region52: #{conv2d_block_forward.1} parent=47 // pred_fallthru
        _
    $region48: #{conv2d_block_forward.1} parent=5 // pred_fallthru
      _
  $region6: #{conv2d_block_forward.1} parent=0 // loop_footer
    %s15 = sadd.s32 1, %s11
  $region7: #{conv2d_block_forward.1} parent=0 // loop_footer_branch
    %10 = sbr.rel target = $region3
  $region8: #{conv2d_block_forward.1} parent=0 // loop_exit
    _

</llo_original>
